<compile_context>
chip_gen: v6e
topology: v6e:2x2x1
jax: 0.10.0
libtpu: 0.0.40
codegen_flags: <defaults>
</compile_context>

<pallas_src>
import jax
import jax.numpy as jnp
from jax.experimental import pallas as pl
from jax.experimental.pallas import tpu as pltpu


# -------------------- helpers --------------------

def _round_up(a, b):
    return (a + b - 1) // b * b


def _pick_f_tile(F):
    for cand in (512, 256, 128):
        if F % cand == 0:
            return cand
    return F  # small / irregular F: use the full dimension (valid BlockSpec)


# -------------------- Pallas kernels --------------------

def _gate_kernel(x_ref, gw_ref, o_ref):
    # router_logits = x @ gate_w_t  (gate weight pre-transposed & lane-padded to 128)
    o_ref[...] = jnp.dot(x_ref[...], gw_ref[...],
                         preferred_element_type=jnp.float32)


def _moe_expert_kernel(x_ref, w1_ref, w3_ref, w2_ref, rw_ref, o_ref, acc_ref):
    # grid = (token_tiles, num_experts, F_chunks); (expert, F) are reduction axes.
    e = pl.program_id(1)
    f = pl.program_id(2)
    ne = pl.num_programs(1)
    nf = pl.num_programs(2)

    @pl.when(jnp.logical_and(e == 0, f == 0))
    def _():
        acc_ref[...] = jnp.zeros_like(acc_ref)

    x = x_ref[...]                                                     # (tT, H)
    h1 = jnp.dot(x, w1_ref[0], preferred_element_type=jnp.float32)     # (tT, tF)
    h3 = jnp.dot(x, w3_ref[0], preferred_element_type=jnp.float32)     # (tT, tF)
    act = (h1 * jax.nn.sigmoid(h1)) * h3                               # SiLU(w1 x) * (w3 x)
    part = jnp.dot(act.astype(x.dtype), w2_ref[0],
                   preferred_element_type=jnp.float32)                 # (tT, H)
    scale = rw_ref[0].astype(jnp.float32)                              # (tT, 1)
    acc_ref[...] += part * scale                                       # f32 accumulation

    @pl.when(jnp.logical_and(e == ne - 1, f == nf - 1))
    def _():
        o_ref[...] = acc_ref[...].astype(o_ref.dtype)


# -------------------- one-time parameter preparation --------------------

def prepare_moe_params(gate_w, w1, w2, w3):
    """Call ONCE at parameter-init time (not per forward).

    gate_w: (E, H); w1, w3: (E, F, H); w2: (E, H, F)  -- PyTorch nn.Linear layouts.
    Returns weights laid out for row-major `x @ w` MXU matmuls; gate weight is
    lane-padded to 128 outputs so the Pallas gate store is lane-dense.
    """
    E, F, H = w1.shape
    Ep = _round_up(max(E, 1), 128)
    gate_w_t = jnp.zeros((H, Ep), gate_w.dtype).at[:, :E].set(gate_w.T)
    w1_t = jnp.transpose(w1, (0, 2, 1))   # (E, H, F)
    w3_t = jnp.transpose(w3, (0, 2, 1))   # (E, H, F)
    w2_t = jnp.transpose(w2, (0, 2, 1))   # (E, F, H)
    return gate_w_t, w1_t, w2_t, w3_t


# -------------------- forward --------------------

def sync_mixtral_sparse_moe_block(hidden_states, gate_w_t, w1_t, w2_t, w3_t, top_k):
    """Returns (final_hidden_states (B,S,H), router_logits (B*S, num_experts))."""
    B, S, H = hidden_states.shape
    T = B * S
    E, _, F = w1_t.shape
    Ep = gate_w_t.shape[1]
    dtype = hidden_states.dtype

    # token / F tiling (8-aligned tokens, 128-aligned F chunks when possible)
    tT = min(256, _round_up(T, 8))
    T_pad = _round_up(T, tT)
    tF = _pick_f_tile(F)

    x = hidden_states.reshape(T, H)
    xp = x if T_pad == T else jnp.pad(x, ((0, T_pad - T), (0, 0)))

    # ---- gate (router) matmul in Pallas, tiled over tokens, lane-padded output ----
    logits_pad = pl.pallas_call(
        _gate_kernel,
        out_shape=jax.ShapeDtypeStruct((T_pad, Ep), jnp.float32),
        grid_spec=pltpu.PrefetchScalarGridSpec(
            num_scalar_prefetch=0,
            grid=(T_pad // tT,),
            in_specs=[
                pl.BlockSpec((tT, H), lambda t: (t, 0)),
                pl.BlockSpec((H, Ep), lambda t: (0, 0)),
            ],
            out_specs=pl.BlockSpec((tT, Ep), lambda t: (t, 0)),
        ),
        compiler_params=pltpu.CompilerParams(
            dimension_semantics=("parallel",)),
    )(xp, gate_w_t)
    router_logits = logits_pad[:T, :E]

    # ---- routing (softmax / top-k / renormalize): small glue in plain JAX ----
    probs = jax.nn.softmax(router_logits, axis=-1)         # already float32
    top_w, top_idx = jax.lax.top_k(probs, top_k)
    top_w = top_w / jnp.sum(top_w, axis=-1, keepdims=True)
    top_w = top_w.astype(dtype)

    # dense per-token, per-expert weight (== routing_weights_mask in PyTorch code)
    dense_w = jnp.zeros((T, E), dtype)
    dense_w = dense_w.at[jnp.arange(T)[:, None], top_idx].add(top_w)
    if T_pad != T:
        dense_w = jnp.pad(dense_w, ((0, T_pad - T), (0, 0)))   # padded tokens -> 0
    rw = jnp.transpose(dense_w)[:, :, None]                    # (E, T_pad, 1) -- tiny

    # VMEM budget: double-buffered tiles + f32 accumulator, clamped to stay safe on
    # v5e/v6e/v7x.  (At production Mixtral shapes, tune per generation.)
    per_step = (2 * tT * H * xp.dtype.itemsize            # x block (double-buffered)
                + 2 * 3 * tF * H * w1_t.dtype.itemsize    # w1/w3/w2 chunks
                + 2 * tT * rw.dtype.itemsize               # routing scale sliver
                + tT * H * 4                               # f32 accumulator
                + 2 * tT * H * dtype.itemsize)             # output block
    vmem_limit = int(min(max(2 * per_step, 32 << 20), 48 << 20))

    # ---- expert MLP hot path in Pallas ----
    grid = (T_pad // tT, E, F // tF)
    final = pl.pallas_call(
        _moe_expert_kernel,
        out_shape=jax.ShapeDtypeStruct((T_pad, H), dtype),
        grid_spec=pltpu.PrefetchScalarGridSpec(
            num_scalar_prefetch=0,
            grid=grid,
            in_specs=[
                pl.BlockSpec((tT, H), lambda t, e, f: (t, 0)),       # x (resident over e,f)
                pl.BlockSpec((1, H, tF), lambda t, e, f: (e, 0, f)),  # w1_t chunk
                pl.BlockSpec((1, H, tF), lambda t, e, f: (e, 0, f)),  # w3_t chunk
                pl.BlockSpec((1, tF, H), lambda t, e, f: (e, f, 0)),  # w2_t chunk
                pl.BlockSpec((1, tT, 1), lambda t, e, f: (e, t, 0)),  # routing scale
            ],
            out_specs=pl.BlockSpec((tT, H), lambda t, e, f: (t, 0)),
            scratch_shapes=[pltpu.VMEM((tT, H), jnp.float32)],        # f32 accumulator
        ),
        compiler_params=pltpu.CompilerParams(
            dimension_semantics=("parallel", "arbitrary", "arbitrary"),
            vmem_limit_bytes=vmem_limit),
    )(xp, w1_t, w3_t, w2_t, rw)

    final = final[:T]
    return final.reshape(B, S, H), router_logits.astype(dtype)


# -------------------- pure-JAX reference --------------------

def _reference(hidden_states, gate_w, w1, w2, w3, top_k):
    B, S, H = hidden_states.shape
    E = gate_w.shape[0]
    x = hidden_states.reshape(-1, H)
    rl = x @ gate_w.T
    p = jax.nn.softmax(rl.astype(jnp.float32), axis=-1)
    tw, ti = jax.lax.top_k(p, top_k)
    tw = tw / tw.sum(-1, keepdims=True)
    dense = jnp.zeros((x.shape[0], E), jnp.float32)
    dense = dense.at[jnp.arange(x.shape[0])[:, None], ti].add(tw)
    out = jnp.zeros_like(x)
    for e in range(E):
        act = jax.nn.silu(x @ w1[e].T) * (x @ w3[e].T)
        out = out + (act @ w2[e].T) * dense[:, e:e + 1]
    return out.reshape(B, S, H), rl


# -------------------- main --------------------

if __name__ == "__main__":
    B, S, H, F, E, K = 2, 8, 32, 64, 8, 2

    key = jax.random.PRNGKey(0)
    kx, kg, k1, k2, k3 = jax.random.split(key, 5)
    x = jax.random.normal(kx, (B, S, H), jnp.float32)
    gate_w = jax.random.normal(kg, (E, H), jnp.float32) * 0.1
    w1 = jax.random.normal(k1, (E, F, H), jnp.float32) * 0.1   # nn.Linear(H, F).weight
    w2 = jax.random.normal(k2, (E, H, F), jnp.float32) * 0.1   # nn.Linear(F, H).weight
    w3 = jax.random.normal(k3, (E, F, H), jnp.float32) * 0.1   # nn.Linear(H, F).weight

    # one-time parameter preparation (outside the forward / generation loop)
    gate_w_t, w1_t, w2_t, w3_t = prepare_moe_params(gate_w, w1, w2, w3)
    (gate_w_t, w1_t, w2_t, w3_t) = jax.block_until_ready((gate_w_t, w1_t, w2_t, w3_t))

    out, logits = sync_mixtral_sparse_moe_block(x, gate_w_t, w1_t, w2_t, w3_t, K)
    (out, logits) = jax.block_until_ready((out, logits))

    ref_out, ref_logits = _reference(x, gate_w, w1, w2, w3, K)
    assert out.shape == (B, S, H) and logits.shape == (B * S, E)
    assert jnp.allclose(logits, ref_logits, atol=1e-4, rtol=1e-4)
    assert jnp.allclose(out, ref_out, atol=1e-4, rtol=1e-4)

    print("KERNEL_OK")
</pallas_src>

<mosaic_0001>
module attributes {stable_mosaic.version = 11 : i64} {
  func.func @_gate_kernel(%arg0: i32, %arg1: memref<16x32xf32, #tpu.memory_space<vmem>>, %arg2: memref<32x128xf32, #tpu.memory_space<vmem>>, %arg3: memref<16x128xf32, #tpu.memory_space<vmem>>) attributes {dimension_semantics = [#tpu.dimension_semantics<parallel>], iteration_bounds = array<i64: 1>, scalar_prefetch = 0 : i64, scratch_operands = 0 : i64, tpu.core_type = #tpu.core_type<tc>, window_params = [{transform_indices = @transform_0, window_bounds = array<i64: 16, 32>}, {pipeline_mode = #tpu.pipeline_mode<synchronous>, transform_indices = @transform_1, window_bounds = array<i64: 32, 128>}, {transform_indices = @transform_2, window_bounds = array<i64: 16, 128>}]} {
    %c0 = arith.constant 0 : index
    %c0_0 = arith.constant 0 : index
    %0 = vector.load %arg1[%c0, %c0_0] : memref<16x32xf32, #tpu.memory_space<vmem>>, vector<16x32xf32>
    %c0_1 = arith.constant 0 : index
    %c0_2 = arith.constant 0 : index
    %1 = vector.load %arg2[%c0_1, %c0_2] : memref<32x128xf32, #tpu.memory_space<vmem>>, vector<32x128xf32>
    %cst = arith.constant dense<0.000000e+00> : vector<16x128xf32>
    %2 = tpu.matmul %0, %1, %cst {dimension_numbers = #tpu.dot_dimension_numbers<[1], [0], [0], [1], [0, 0, 1, 1], [], []>} : vector<16x32xf32>, vector<32x128xf32>, vector<16x128xf32> -> vector<16x128xf32>
    %c0_3 = arith.constant 0 : index
    %c0_4 = arith.constant 0 : index
    %3 = vector.load %arg3[%c0_3, %c0_4] : memref<16x128xf32, #tpu.memory_space<vmem>>, vector<16x128xf32>
    tpu.vector_store %arg3[%c0_3, %c0_4], %2 {strides = array<i32>} : memref<16x128xf32, #tpu.memory_space<vmem>>, vector<16x128xf32>,
    return
  }
  func.func @transform_0(%arg0: i32) -> (i32, i32) {
    %c0_i32 = arith.constant 0 : i32
    %c0_i32_0 = arith.constant 0 : i32
    return %arg0, %c0_i32 : i32, i32
  }
  func.func @transform_1(%arg0: i32) -> (i32, i32) {
    %c0_i32 = arith.constant 0 : i32
    %c0_i32_0 = arith.constant 0 : i32
    %c0_i32_1 = arith.constant 0 : i32
    return %c0_i32, %c0_i32_0 : i32, i32
  }
  func.func @transform_2(%arg0: i32) -> (i32, i32) {
    %c0_i32 = arith.constant 0 : i32
    %c0_i32_0 = arith.constant 0 : i32
    return %arg0, %c0_i32 : i32, i32
  }
}

</mosaic_0001>

<llo_original>
// kernel: tpu_custom_call.1
$region0: #{tpu_custom_call.1}
  #allocation0 [shape = 'u32[]', space=smem, size = 0x4, offset = 0x4, fixed_abs, tag = 'smem constant byte address 0x4 - core index']
  #allocation1 [shape = 'u32[144,128]{1,0:T(1,128)}', space=vmem, size = 0x12000, scoped, tag = 'internal scratch']
  %s0 = inlined_call_operand.hbm [shape: f32[16,32], index: 0, kind: input, shape index: {}]
  %s1 = inlined_call_operand.hbm [shape: f32[32,128], index: 1, kind: input, shape index: {}]
  %s2 = inlined_call_operand.hbm [shape: f32[16,128], index: 2, kind: output, shape index: {}]
  %s3 = sld [smem:[#allocation0]]
  $region26: #{tpu_custom_call.1} parent=0
    _
  %s5 = ssub.s32 1, %s3
  %s6 = scalar_select 0, %s5, %s3
  $region1: #{tpu_custom_call.1} parent=0
    #allocation2 [shape = 'u8[8192]{0}', space=vmem, size = 0x2000, scoped, tag = 'input window, operand 0, single buffered']
    #allocation3 [shape = 's32[1]{0}', space=sflag, size = 0x4, scoped, tag = 'scoped memory for tpu_custom_call.1']
    #allocation4 [shape = 's32[1]{0}', space=sflag, size = 0x4, scoped, tag = 'scoped memory for tpu_custom_call.1']
    #allocation5 [shape = 'u8[16384]{0}', space=vmem, size = 0x4000, scoped, tag = 'input window, operand 1, single buffered']
    #allocation6 [shape = 's32[1]{0}', space=sflag, size = 0x4, scoped, tag = 'scoped memory for tpu_custom_call.1']
    #allocation7 [shape = 'u8[8192]{0}', space=vmem, size = 0x2000, scoped, tag = 'output window, operand 0, single buffered']
    %7 = vsyncpa [#allocation3], 0
    %8 = vsyncpa [#allocation6], 0
    %9 = vsyncpa [#allocation4], 0
    // Predicated region
    $region2: #{tpu_custom_call.1} parent=1 // pred_check
      _
    $region3: #{tpu_custom_call.1} parent=1 // pred_check_branch
      %11 = sbr.rel (0) target = $region5
    $region4: #{tpu_custom_call.1} parent=1 // pred_region
      %s13 = ssub.s32 256, 256
      %14 = vsyncadd [#allocation3], %s13
      %s15 = sshll.u32 [#allocation2], 4
      %s16 = int_to_ptr.vmem [resolvable:$true] %s15
      %21 = dma.hbm_to_vmem [thread:$0]  %s0, 256, %s16, [#allocation3], 128, 128, 8
    $region5: #{tpu_custom_call.1} parent=1 // pred_fallthru
      _
    // Predicated region
    $region6: #{tpu_custom_call.1} parent=1 // pred_check
      _
    $region7: #{tpu_custom_call.1} parent=1 // pred_check_branch
      %23 = sbr.rel (0) target = $region9
    $region8: #{tpu_custom_call.1} parent=1 // pred_region
      %s25 = ssub.s32 512, 512
      %26 = vsyncadd [#allocation6], %s25
      %s27 = sshll.u32 [#allocation5], 4
      %s28 = int_to_ptr.vmem [resolvable:$true] %s27
      %33 = dma.hbm_to_vmem [thread:$0]  %s1, 512, %s28, [#allocation6], 128, 128, 8
    $region9: #{tpu_custom_call.1} parent=1 // pred_fallthru
      _
    // Predicated region
    $region10: #{tpu_custom_call.1} parent=1 // pred_check
      _
    $region11: #{tpu_custom_call.1} parent=1 // pred_check_branch
      %35 = sbr.rel (0) target = $region13
    $region12: #{tpu_custom_call.1} parent=1 // pred_region
      %36 = dma.done [#allocation3], 256
    $region13: #{tpu_custom_call.1} parent=1 // pred_fallthru
      _
    // Predicated region
    $region14: #{tpu_custom_call.1} parent=1 // pred_check
      _
    $region15: #{tpu_custom_call.1} parent=1 // pred_check_branch
      %38 = sbr.rel (0) target = $region17
    $region16: #{tpu_custom_call.1} parent=1 // pred_region
      %39 = dma.done [#allocation6], 512
    $region17: #{tpu_custom_call.1} parent=1 // pred_fallthru
      _
    %v40 = vld [vmem:[#allocation2] sm:$0xff]
    %v41 = vld [vmem:[#allocation2 + $0x8] sm:$0xff]
    %v42 = vld [vmem:[#allocation5] sm:$0xff]
    %v43 = vld [vmem:[#allocation5 + $0x8] sm:$0xff]
    %v44 = vld [vmem:[#allocation5 + $0x10] sm:$0xff]
    %v45 = vld [vmem:[#allocation5 + $0x18] sm:$0xff]
    %vm46 = vcmask 261120
    %v48 = vsel %vm46, %v40, 0
    %v51 = vsel %vm46, %v41, 0
    %53 = vmatprep.subr.mxu0 0.0
    %54 = vmatpush1.msra.mxu0 0.0
    %55 = vmatprep.subr.mxu0 0.0
    %56 = vmatpush1.msra.mxu0 0.0
    %57 = vmatprep.subr.mxu0 0.0
    %58 = vmatpush1.msra.mxu0 0.0
    %59 = vmatprep.subr.mxu0 0.0
    %60 = vmatpush1.msra.mxu0 0.0
    %61 = vmatprep.subr.mxu0 0.0
    %62 = vmatpush1.msra.mxu0 0.0
    %63 = vmatprep.subr.mxu0 0.0
    %64 = vmatpush1.msra.mxu0 0.0
    %65 = vmatprep.subr.mxu0 0.0
    %66 = vmatpush1.msra.mxu0 0.0
    %67 = vmatprep.subr.mxu0 0.0
    %68 = vmatpush1.msra.mxu0 0.0
    %69 = vmatprep.subr.mxu0 0.0
    %70 = vmatpush1.msra.mxu0 0.0
    %71 = vmatprep.subr.mxu0 0.0
    %72 = vmatpush1.msra.mxu0 0.0
    %73 = vmatprep.subr.mxu0 0.0
    %74 = vmatpush1.msra.mxu0 0.0
    %75 = vmatprep.subr.mxu0 0.0
    %76 = vmatpush1.msra.mxu0 0.0
    %77 = vmatprep.subr.mxu0 0.0
    %78 = vmatpush1.msra.mxu0 %v45
    %79 = vmatprep.subr.mxu0 0.0
    %80 = vmatpush1.msra.mxu0 %v44
    %81 = vmatprep.subr.mxu0 0.0
    %82 = vmatpush1.msra.mxu0 %v43
    %83 = vmatprep.subr.mxu0 0.0
    %84 = vmatpush1.msra.mxu0 %v42
    %85 = vmatprep.subr.mxu0 0.0
    %86 = vmatpush2.msra.mxu0 0.0
    %87 = vmatprep.subr.mxu0 0.0
    %88 = vmatpush2.msra.mxu0 0.0
    %89 = vmatprep.subr.mxu0 0.0
    %90 = vmatpush2.msra.mxu0 0.0
    %91 = vmatprep.subr.mxu0 0.0
    %92 = vmatpush2.msra.mxu0 0.0
    %93 = vmatprep.subr.mxu0 0.0
    %94 = vmatpush2.msra.mxu0 0.0
    %95 = vmatprep.subr.mxu0 0.0
    %96 = vmatpush2.msra.mxu0 0.0
    %97 = vmatprep.subr.mxu0 0.0
    %98 = vmatpush2.msra.mxu0 0.0
    %99 = vmatprep.subr.mxu0 0.0
    %100 = vmatpush2.msra.mxu0 0.0
    %101 = vmatprep.subr.mxu0 0.0
    %102 = vmatpush2.msra.mxu0 0.0
    %103 = vmatprep.subr.mxu0 0.0
    %104 = vmatpush2.msra.mxu0 0.0
    %105 = vmatprep.subr.mxu0 0.0
    %106 = vmatpush2.msra.mxu0 0.0
    %107 = vmatprep.subr.mxu0 0.0
    %108 = vmatpush2.msra.mxu0 0.0
    %109 = vmatprep.subr.mxu0 0.0
    %110 = vmatpush2.msra.mxu0 0.0
    %111 = vmatprep.subr.mxu0 0.0
    %112 = vmatpush2.msra.mxu0 0.0
    %113 = vmatprep.subr.mxu0 0.0
    %114 = vmatpush2.msra.mxu0 0.0
    %115 = vmatprep.subr.mxu0 0.0
    %116 = vmatpush2.msra.mxu0 0.0
    %117 = vmatprep.mubr.f32.mxu0 0.0
    %118 = vmatmul.mubr.f32.gmra.mxu0 %v48
    %v119 = vpop.f32.mrf.mxu0
    %v120 = vadd.f32 0.0, %v119
    %v121 = vpop.f32.mrf.mxu0
    %122 = vmatprep.mubr.f32.mxu0 0.0
    %123 = vmatmul.mubr.f32.gmra.mxu0 %v51
    %v124 = vpop.f32.mrf.mxu0
    %v125 = vadd.f32 0.0, %v124
    %v126 = vpop.f32.mrf.mxu0
    %127 = vdwg.mxu0
    %128 = vst [vmem:[#allocation7] sm:$0xff] %v120
    %129 = vst [vmem:[#allocation7 + $0x8] sm:$0xff] %v125
    // Predicated region
    $region18: #{tpu_custom_call.1} parent=1 // pred_check
      _
    $region19: #{tpu_custom_call.1} parent=1 // pred_check_branch
      %131 = sbr.rel (0) target = $region21
    $region20: #{tpu_custom_call.1} parent=1 // pred_region
      %s133 = ssub.s32 256, 256
      %134 = vsyncadd [#allocation4], %s133
      %s135 = sshll.u32 [#allocation7], 4
      %s136 = int_to_ptr.vmem [resolvable:$true] %s135
      %141 = dma.vmem_to_hbm [thread:$0]  %s136, 256, %s2, [#allocation4], 128, 128, 8
    $region21: #{tpu_custom_call.1} parent=1 // pred_fallthru
      _
    // Predicated region
    $region22: #{tpu_custom_call.1} parent=1 // pred_check
      _
    $region23: #{tpu_custom_call.1} parent=1 // pred_check_branch
      %143 = sbr.rel (0) target = $region25
    $region24: #{tpu_custom_call.1} parent=1 // pred_region
      %144 = dma.done [#allocation4], 256
    $region25: #{tpu_custom_call.1} parent=1 // pred_fallthru
      _
    %145 = vsyncpa [#allocation3], 1
    %146 = vsyncpa [#allocation6], 1
    %147 = vsyncpa [#allocation4], 1

</llo_original>
